<compile_context>
chip_gen: v7x
topology: tpu7x:2x2x1
jax: 0.10.0
libtpu: 0.0.40
codegen_flags: <defaults>
</compile_context>

<pallas_src>
import functools

import jax
import jax.numpy as jnp
from jax import lax
from jax.experimental import pallas as pl
from jax.experimental.pallas import tpu as pltpu


HIDDEN = 64


def _round_up(x, m):
    return ((x + m - 1) // m) * m


def _mlp_value_kernel(x_ref, w1_ref, b1_ref, w2_ref, b2_ref, w3_ref, b3_ref,
                      o_ref, *, compute_dtype):
    # x_ref: (tb, in_features) -- exactly as obs lives in HBM (no host-side
    # transpose).  Layer 1 contracts in_features of BOTH operands, so the
    # result lands batch-on-lanes: (HIDDEN, tb).
    x = x_ref[...].astype(compute_dtype)

    s1 = lax.dot_general(w1_ref[...], x, (((1,), (1,)), ((), ())),
                         preferred_element_type=jnp.float32)
    h1 = jnp.tanh((s1 + b1_ref[...]).astype(compute_dtype))      # (HIDDEN, tb)

    s2 = jnp.dot(w2_ref[...], h1, preferred_element_type=jnp.float32)
    h2 = jnp.tanh((s2 + b2_ref[...]).astype(compute_dtype))      # (HIDDEN, tb)

    s3 = jnp.dot(w3_ref[...], h2, preferred_element_type=jnp.float32)
    o_ref[...] = (s3 + b3_ref[...]).astype(o_ref.dtype)          # (1, tb)


def _default_compute_dtype():
    # bf16 VPU/EUP path exists on v6e / v7x; keep f32 on v5e and older.
    try:
        kind = jax.devices()[0].device_kind.lower()
    except Exception:
        return jnp.float32
    if "v6" in kind or "v7" in kind or "7x" in kind:
        return jnp.bfloat16
    return jnp.float32


def _vmem_capacity_bytes():
    try:
        return int(pltpu.get_tpu_info().vmem_capacity_bytes)
    except Exception:
        return 64 << 20  # v7x per-TensorCore floor


def _choose_tb(batch, in_features, vmem_limit_bytes):
    """Pick the batch tile (lane count per grid step).

    Sized against the scoped VMEM budget, capped at 8192, clamped so that the
    grid has >= 2 steps whenever batch > 128 (both v7x TensorCores get work),
    and never larger than the array (no block > dim)."""
    if batch <= 128:
        return batch  # single exact block, no ragged edge at all
    budget = int(vmem_limit_bytes * 0.6)
    weight_bytes = 4 * (HIDDEN * in_features + HIDDEN * HIDDEN + 3 * HIDDEN + 2)
    # Per batch lane: double-buffered f32 obs tile + double-buffered f32 output
    # tile + ~4 (HIDDEN, tb) f32 activation temporaries (compiler scratch).
    per_lane = 4 * in_features * 2 + 4 * 2 + 4 * HIDDEN * 4
    tb = max(0, budget - weight_bytes) // per_lane
    tb = max(256, min(8192, (tb // 256) * 256))
    b128 = _round_up(batch, 128)
    # >= 2 grid steps (v7x megacore); this cap is always <= batch for batch>128.
    tb = min(tb, _round_up(pl.cdiv(b128, 2), 128))
    return max(tb, 128)


def state_to_value(obs, params, *, tb=None, compute_dtype=None):
    """obs: (B, in_features) f32 -> value: (B, 1) f32."""
    w1, b1, w2, b2, w3, b3 = params
    B, in_features = obs.shape

    if compute_dtype is None:
        compute_dtype = _default_compute_dtype()

    vmem_cap = _vmem_capacity_bytes()
    vmem_limit = min(vmem_cap // 2, 64 << 20)  # explicit scoped-VMEM request

    if tb is None:
        tb = _choose_tb(B, in_features, vmem_limit)
    else:
        tb = min(int(tb), B)
        if tb < B:  # keep lane dim of the output tile a multiple of 128
            tb = min(B, max(128, (tb // 128) * 128))
    grid = (pl.cdiv(B, tb),)

    # Weights in compute dtype (bf16 on v6e/v7x), biases stay f32 (added to the
    # f32 accumulators).
    w1c = w1.astype(compute_dtype)
    w2c = w2.astype(compute_dtype)
    w3c = w3.astype(compute_dtype)
    b1c = b1.astype(jnp.float32)
    b2c = b2.astype(jnp.float32)
    b3c = b3.astype(jnp.float32)

    # Full-block, constant index_map -> VMEM-resident across the whole grid.
    def const_spec(a):
        return pl.BlockSpec(a.shape, lambda i, _n=a.ndim: (0,) * _n)

    cost = pl.CostEstimate(
        flops=2 * B * HIDDEN * (in_features + HIDDEN + 1),
        transcendentals=2 * B * HIDDEN,
        bytes_accessed=4 * B * (in_features + 1)
        + 4 * (HIDDEN * in_features + HIDDEN * HIDDEN + 3 * HIDDEN + 2),
    )

    out = pl.pallas_call(
        functools.partial(_mlp_value_kernel, compute_dtype=compute_dtype),
        out_shape=jax.ShapeDtypeStruct((1, B), jnp.float32),
        grid=grid,
        in_specs=[
            pl.BlockSpec((tb, in_features), lambda i: (i, 0)),  # obs tile (pipelined)
            const_spec(w1c),
            const_spec(b1c),
            const_spec(w2c),
            const_spec(b2c),
            const_spec(w3c),
            const_spec(b3c),
        ],
        out_specs=pl.BlockSpec((1, tb), lambda i: (0, i)),  # lane-dense output
        compiler_params=pltpu.CompilerParams(
            dimension_semantics=("parallel",),  # batch tiles split across TCs (v7x)
            vmem_limit_bytes=vmem_limit,
        ),
        cost_estimate=cost,
    )(obs, w1c, b1c, w2c, b2c, w3c, b3c)

    return out.T  # (B, 1)


def _orthogonal(key, shape, gain):
    """Deterministic orthogonal init (mirrors tp_torch_utils.layer_init semantics)."""
    rows, cols = shape
    a = jax.random.normal(key, (max(rows, cols), min(rows, cols)), jnp.float32)
    q, r = jnp.linalg.qr(a)
    sign = jnp.sign(jnp.diag(r))
    sign = jnp.where(sign == 0, 1.0, sign)  # guard exactly-zero diagonal
    q = q * sign
    if rows < cols:
        q = q.T
    return (gain * q[:rows, :cols]).astype(jnp.float32)


def init_params(key, in_features, hidden=HIDDEN):
    """Weights in PyTorch (out, in) layout; biases as (out, 1) columns."""
    k1, k2, k3 = jax.random.split(key, 3)
    sqrt2 = float(jnp.sqrt(2.0))
    w1 = _orthogonal(k1, (hidden, in_features), gain=sqrt2)
    b1 = jnp.zeros((hidden, 1), jnp.float32)
    w2 = _orthogonal(k2, (hidden, hidden), gain=sqrt2)
    b2 = jnp.zeros((hidden, 1), jnp.float32)
    w3 = _orthogonal(k3, (1, hidden), gain=1.0)
    b3 = jnp.zeros((1, 1), jnp.float32)
    return (w1, b1, w2, b2, w3, b3)


if __name__ == "__main__":
    key = jax.random.PRNGKey(0)
    k_obs, k_params = jax.random.split(key)

    B, IN_FEATURES = 8, 8  # LunarLander observation dim = 8
    obs = jax.random.normal(k_obs, (B, IN_FEATURES), jnp.float32)
    params = init_params(k_params, IN_FEATURES)

    value = state_to_value(obs, params)
    jax.block_until_ready(value)

    # Reference check in plain JAX (PyTorch semantics: y = x @ W.T + b), f32.
    w1, b1, w2, b2, w3, b3 = params
    ref = jnp.tanh(obs @ w1.T + b1[:, 0])
    ref = jnp.tanh(ref @ w2.T + b2[:, 0])
    ref = ref @ w3.T + b3[:, 0]

    # Looser tolerance when the bf16 fast path is active (v6e/v7x).
    tol = 1e-5 if _default_compute_dtype() == jnp.float32 else 2e-2
    assert value.shape == (B, 1)
    assert jnp.allclose(value, ref, atol=tol, rtol=tol)

    print("KERNEL_OK")
</pallas_src>

<mosaic_0001>
module attributes {stable_mosaic.version = 11 : i64} {
  func.func @_mlp_value_kernel(%arg0: i32, %arg1: memref<8x8xf32, #tpu.memory_space<vmem>>, %arg2: memref<64x8xf32, #tpu.memory_space<vmem>>, %arg3: memref<64x1xf32, #tpu.memory_space<vmem>>, %arg4: memref<64x64xf32, #tpu.memory_space<vmem>>, %arg5: memref<64x1xf32, #tpu.memory_space<vmem>>, %arg6: memref<1x64xf32, #tpu.memory_space<vmem>>, %arg7: memref<1x1xf32, #tpu.memory_space<vmem>>, %arg8: memref<1x8xf32, #tpu.memory_space<vmem>>) attributes {dimension_semantics = [#tpu.dimension_semantics<parallel>], iteration_bounds = array<i64: 1>, scalar_prefetch = 0 : i64, scratch_operands = 0 : i64, tpu.core_type = #tpu.core_type<tc>, window_params = [{transform_indices = @transform_0, window_bounds = array<i64: 8, 8>}, {pipeline_mode = #tpu.pipeline_mode<synchronous>, transform_indices = @transform_1, window_bounds = array<i64: 64, 8>}, {pipeline_mode = #tpu.pipeline_mode<synchronous>, transform_indices = @transform_2, window_bounds = array<i64: 64, 1>}, {pipeline_mode = #tpu.pipeline_mode<synchronous>, transform_indices = @transform_3, window_bounds = array<i64: 64, 64>}, {pipeline_mode = #tpu.pipeline_mode<synchronous>, transform_indices = @transform_4, window_bounds = array<i64: 64, 1>}, {pipeline_mode = #tpu.pipeline_mode<synchronous>, transform_indices = @transform_5, window_bounds = array<i64: 1, 64>}, {pipeline_mode = #tpu.pipeline_mode<synchronous>, transform_indices = @transform_6, window_bounds = array<i64: 1, 1>}, {transform_indices = @transform_7, window_bounds = array<i64: 1, 8>}]} {
    %c0 = arith.constant 0 : index
    %c0_0 = arith.constant 0 : index
    %0 = vector.load %arg1[%c0, %c0_0] : memref<8x8xf32, #tpu.memory_space<vmem>>, vector<8x8xf32>
    %c0_1 = arith.constant 0 : index
    %c0_2 = arith.constant 0 : index
    %1 = vector.load %arg2[%c0_1, %c0_2] : memref<64x8xf32, #tpu.memory_space<vmem>>, vector<64x8xf32>
    %cst = arith.constant dense<0.000000e+00> : vector<64x8xf32>
    %2 = tpu.matmul %1, %0, %cst {dimension_numbers = #tpu.dot_dimension_numbers<[1], [1], [0], [0], [0, 0, 1, 0], [], []>} : vector<64x8xf32>, vector<8x8xf32>, vector<64x8xf32> -> vector<64x8xf32>
    %c0_3 = arith.constant 0 : index
    %c0_4 = arith.constant 0 : index
    %3 = vector.load %arg3[%c0_3, %c0_4] : memref<64x1xf32, #tpu.memory_space<vmem>>, vector<64x1xf32>
    %4 = vector.broadcast %3 : vector<64x1xf32> to vector<64x8xf32>
    %5 = arith.addf %2, %4 : vector<64x8xf32>
    %6 = math.tanh %5 : vector<64x8xf32>
    %c0_5 = arith.constant 0 : index
    %c0_6 = arith.constant 0 : index
    %7 = vector.load %arg4[%c0_5, %c0_6] : memref<64x64xf32, #tpu.memory_space<vmem>>, vector<64x64xf32>
    %cst_7 = arith.constant dense<0.000000e+00> : vector<64x8xf32>
    %8 = tpu.matmul %7, %6, %cst_7 {dimension_numbers = #tpu.dot_dimension_numbers<[1], [0], [0], [1], [0, 0, 1, 1], [], []>} : vector<64x64xf32>, vector<64x8xf32>, vector<64x8xf32> -> vector<64x8xf32>
    %c0_8 = arith.constant 0 : index
    %c0_9 = arith.constant 0 : index
    %9 = vector.load %arg5[%c0_8, %c0_9] : memref<64x1xf32, #tpu.memory_space<vmem>>, vector<64x1xf32>
    %10 = vector.broadcast %9 : vector<64x1xf32> to vector<64x8xf32>
    %11 = arith.addf %8, %10 : vector<64x8xf32>
    %12 = math.tanh %11 : vector<64x8xf32>
    %c0_10 = arith.constant 0 : index
    %c0_11 = arith.constant 0 : index
    %13 = vector.load %arg6[%c0_10, %c0_11] : memref<1x64xf32, #tpu.memory_space<vmem>>, vector<1x64xf32>
    %cst_12 = arith.constant dense<0.000000e+00> : vector<1x8xf32>
    %14 = tpu.matmul %13, %12, %cst_12 {dimension_numbers = #tpu.dot_dimension_numbers<[1], [0], [0], [1], [0, 0, 1, 1], [], []>} : vector<1x64xf32>, vector<64x8xf32>, vector<1x8xf32> -> vector<1x8xf32>
    %c0_13 = arith.constant 0 : index
    %c0_14 = arith.constant 0 : index
    %15 = vector.load %arg7[%c0_13, %c0_14] : memref<1x1xf32, #tpu.memory_space<vmem>>, vector<1x1xf32>
    %16 = vector.broadcast %15 : vector<1x1xf32> to vector<1x8xf32>
    %17 = arith.addf %14, %16 : vector<1x8xf32>
    %c0_15 = arith.constant 0 : index
    %c0_16 = arith.constant 0 : index
    %18 = vector.load %arg8[%c0_15, %c0_16] : memref<1x8xf32, #tpu.memory_space<vmem>>, vector<1x8xf32>
    tpu.vector_store %arg8[%c0_15, %c0_16], %17 {strides = array<i32>} : memref<1x8xf32, #tpu.memory_space<vmem>>, vector<1x8xf32>,
    return
  }
  func.func @transform_0(%arg0: i32) -> (i32, i32) {
    %c0_i32 = arith.constant 0 : i32
    %c0_i32_0 = arith.constant 0 : i32
    return %arg0, %c0_i32 : i32, i32
  }
  func.func @transform_1(%arg0: i32) -> (i32, i32) {
    %c0_i32 = arith.constant 0 : i32
    %c0_i32_0 = arith.constant 0 : i32
    %c0_i32_1 = arith.constant 0 : i32
    return %c0_i32, %c0_i32_0 : i32, i32
  }
  func.func @transform_2(%arg0: i32) -> (i32, i32) {
    %c0_i32 = arith.constant 0 : i32
    %c0_i32_0 = arith.constant 0 : i32
    %c0_i32_1 = arith.constant 0 : i32
    return %c0_i32, %c0_i32_0 : i32, i32
  }
  func.func @transform_3(%arg0: i32) -> (i32, i32) {
    %c0_i32 = arith.constant 0 : i32
    %c0_i32_0 = arith.constant 0 : i32
    %c0_i32_1 = arith.constant 0 : i32
    return %c0_i32, %c0_i32_0 : i32, i32
  }
  func.func @transform_4(%arg0: i32) -> (i32, i32) {
    %c0_i32 = arith.constant 0 : i32
    %c0_i32_0 = arith.constant 0 : i32
    %c0_i32_1 = arith.constant 0 : i32
    return %c0_i32, %c0_i32_0 : i32, i32
  }
  func.func @transform_5(%arg0: i32) -> (i32, i32) {
    %c0_i32 = arith.constant 0 : i32
    %c0_i32_0 = arith.constant 0 : i32
    %c0_i32_1 = arith.constant 0 : i32
    return %c0_i32, %c0_i32_0 : i32, i32
  }
  func.func @transform_6(%arg0: i32) -> (i32, i32) {
    %c0_i32 = arith.constant 0 : i32
    %c0_i32_0 = arith.constant 0 : i32
    %c0_i32_1 = arith.constant 0 : i32
    return %c0_i32, %c0_i32_0 : i32, i32
  }
  func.func @transform_7(%arg0: i32) -> (i32, i32) {
    %c0_i32 = arith.constant 0 : i32
    %c0_i32_0 = arith.constant 0 : i32
    return %c0_i32, %arg0 : i32, i32
  }
}

</mosaic_0001>

<llo_original>
// kernel: tpu_custom_call.1
$region0: #{tpu_custom_call.1}
  #allocation0 [shape = 'u32[]', space=smem, size = 0x4, offset = 0x4, fixed_abs, tag = 'smem constant byte address 0x4 - core index']
  #allocation1 [shape = 'u32[144,128]{1,0:T(1,128)}', space=vmem, size = 0x12000, scoped, tag = 'internal scratch']
  #allocation2 [shape = 'f32[1,1]{1,0:T(1,128)S(1)}', space=vmem, size = 0x200, scoped, tag = 'scoped memory for tpu_custom_call.1']
  %s0 = inlined_call_operand.vmem [shape: f32[8,8], index: 0, kind: input, shape index: {}]
  %s1 = inlined_call_operand.vmem [shape: f32[64,8], index: 1, kind: input, shape index: {}]
  %s2 = inlined_call_operand.vmem [shape: f32[64,1], index: 2, kind: input, shape index: {}]
  %s3 = inlined_call_operand.vmem [shape: f32[64,64], index: 3, kind: input, shape index: {}]
  %s4 = inlined_call_operand.vmem [shape: f32[64,1], index: 4, kind: input, shape index: {}]
  %s5 = inlined_call_operand.vmem [shape: f32[1,64], index: 5, kind: input, shape index: {}]
  %s6 = inlined_call_operand.<no memory space> [shape: f32[1,1], index: 6, kind: input, shape index: {}]
  %s7 = inlined_call_operand.hbm [shape: f32[1,8], index: 7, kind: output, shape index: {}]
  %s8 = sld [smem:[#allocation0]]
  $region38: #{tpu_custom_call.1} parent=0
    _
  %s10 = ssub.s32 1, %s8
  %s11 = scalar_select 0, %s10, %s8
  %v12 = vstv %s6
  %13 = vst [vmem:[#allocation2] sm:$0x1] %v12
  $region1: #{tpu_custom_call.1} parent=0
    #allocation3 [shape = 'u8[512]{0}', space=vmem, size = 0x400, scoped, tag = 'output window, operand 0, single buffered']
    #allocation4 [shape = 's32[1]{0}', space=sflag, size = 0x4, scoped, tag = 'scoped memory for tpu_custom_call.1']
    %14 = vsyncpa [#allocation4], 0
    // Predicated region
    $region2: #{tpu_custom_call.1} parent=1 // pred_check
      _
    $region3: #{tpu_custom_call.1} parent=1 // pred_check_branch
      %16 = sbr.rel (0) target = $region5
    $region4: #{tpu_custom_call.1} parent=1 // pred_region
      _
    $region5: #{tpu_custom_call.1} parent=1 // pred_fallthru
      _
    // Predicated region
    $region6: #{tpu_custom_call.1} parent=1 // pred_check
      _
    $region7: #{tpu_custom_call.1} parent=1 // pred_check_branch
      %18 = sbr.rel (0) target = $region9
    $region8: #{tpu_custom_call.1} parent=1 // pred_region
      _
    $region9: #{tpu_custom_call.1} parent=1 // pred_fallthru
      _
    // Predicated region
    $region10: #{tpu_custom_call.1} parent=1 // pred_check
      _
    $region11: #{tpu_custom_call.1} parent=1 // pred_check_branch
      %20 = sbr.rel (0) target = $region13
    $region12: #{tpu_custom_call.1} parent=1 // pred_region
      _
    $region13: #{tpu_custom_call.1} parent=1 // pred_fallthru
      _
    // Predicated region
    $region14: #{tpu_custom_call.1} parent=1 // pred_check
      _
    $region15: #{tpu_custom_call.1} parent=1 // pred_check_branch
      %22 = sbr.rel (0) target = $region17
    $region16: #{tpu_custom_call.1} parent=1 // pred_region
      _
    $region17: #{tpu_custom_call.1} parent=1 // pred_fallthru
      _
    // Predicated region
    $region18: #{tpu_custom_call.1} parent=1 // pred_check
      _
    $region19: #{tpu_custom_call.1} parent=1 // pred_check_branch
      %24 = sbr.rel (0) target = $region21
    $region20: #{tpu_custom_call.1} parent=1 // pred_region
      _
    $region21: #{tpu_custom_call.1} parent=1 // pred_fallthru
      _
    // Predicated region
    $region22: #{tpu_custom_call.1} parent=1 // pred_check
      _
    $region23: #{tpu_custom_call.1} parent=1 // pred_check_branch
      %26 = sbr.rel (0) target = $region25
    $region24: #{tpu_custom_call.1} parent=1 // pred_region
      _
    $region25: #{tpu_custom_call.1} parent=1 // pred_fallthru
      _
    // Predicated region
    $region26: #{tpu_custom_call.1} parent=1 // pred_check
      _
    $region27: #{tpu_custom_call.1} parent=1 // pred_check_branch
      %28 = sbr.rel (0) target = $region29
    $region28: #{tpu_custom_call.1} parent=1 // pred_region
      _
    $region29: #{tpu_custom_call.1} parent=1 // pred_fallthru
      _
    %v29 = vld [vmem:[%s0] sm:$0xff]
    %v30 = vld [vmem:[%s1] sm:$0xff]
    %v31 = vld [vmem:[%s1 + $0x8] sm:$0xff]
    %v32 = vld [vmem:[%s1 + $0x10] sm:$0xff]
    %v33 = vld [vmem:[%s1 + $0x18] sm:$0xff]
    %v34 = vld [vmem:[%s1 + $0x20] sm:$0xff]
    %v35 = vld [vmem:[%s1 + $0x28] sm:$0xff]
    %v36 = vld [vmem:[%s1 + $0x30] sm:$0xff]
    %v37 = vld [vmem:[%s1 + $0x38] sm:$0xff]
    %v38 = vld [vmem:[%s2] sm:$0xff]
    %v39 = vld [vmem:[%s2 + $0x8] sm:$0xff]
    %v40 = vld [vmem:[%s2 + $0x10] sm:$0xff]
    %v41 = vld [vmem:[%s2 + $0x18] sm:$0xff]
    %v42 = vld [vmem:[%s2 + $0x20] sm:$0xff]
    %v43 = vld [vmem:[%s2 + $0x28] sm:$0xff]
    %v44 = vld [vmem:[%s2 + $0x30] sm:$0xff]
    %v45 = vld [vmem:[%s2 + $0x38] sm:$0xff]
    %47 = vset.pattern.permute.xlu0 0
    %48 = vperm.xlu0 %47, %v38
    %v49 = vpop.permute.xlu0 %48
    %52 = vset.pattern.permute.xlu0 0
    %53 = vperm.xlu0 %52, %v39
    %v54 = vpop.permute.xlu0 %53
    %57 = vset.pattern.permute.xlu0 0
    %58 = vperm.xlu0 %57, %v40
    %v59 = vpop.permute.xlu0 %58
    %62 = vset.pattern.permute.xlu0 0
    %63 = vperm.xlu0 %62, %v41
    %v64 = vpop.permute.xlu0 %63
    %67 = vset.pattern.permute.xlu0 0
    %68 = vperm.xlu0 %67, %v42
    %v69 = vpop.permute.xlu0 %68
    %72 = vset.pattern.permute.xlu0 0
    %73 = vperm.xlu0 %72, %v43
    %v74 = vpop.permute.xlu0 %73
    %77 = vset.pattern.permute.xlu0 0
    %78 = vperm.xlu0 %77, %v44
    %v79 = vpop.permute.xlu0 %78
    %82 = vset.pattern.permute.xlu0 0
    %83 = vperm.xlu0 %82, %v45
    %v84 = vpop.permute.xlu0 %83
    %vm86 = vcmask 64512
    %v88 = vsel %vm86, %v30, 0
    %v91 = vsel %vm86, %v31, 0
    %v94 = vsel %vm86, %v32, 0
    %v97 = vsel %vm86, %v33, 0
    %v100 = vsel %vm86, %v34, 0
    %v103 = vsel %vm86, %v35, 0
    %v106 = vsel %vm86, %v36, 0
    %v109 = vsel %vm86, %v37, 0
    %v112 = vsel %vm86, %v29, 0
    %114 = vmatprep.subr.mxu0 0.0
    %115 = vmatpush1.xpose.msra.mxu0 %v112
    %116 = vmatprep.subr.mxu0 0.0
    %117 = vmatpush1.xpose.msra.mxu0 0.0
    %118 = vmatprep.subr.mxu0 0.0
    %119 = vmatpush1.xpose.msra.mxu0 0.0
    %120 = vmatprep.subr.mxu0 0.0
    %121 = vmatpush1.xpose.msra.mxu0 0.0
    %122 = vmatprep.subr.mxu0 0.0
    %123 = vmatpush1.xpose.msra.mxu0 0.0
    %124 = vmatprep.subr.mxu0 0.0
    %125 = vmatpush1.xpose.msra.mxu0 0.0
    %126 = vmatprep.subr.mxu0 0.0
    %127 = vmatpush1.xpose.msra.mxu0 0.0
    %128 = vmatprep.subr.mxu0 0.0
    %129 = vmatpush1.xpose.msra.mxu0 0.0
    %130 = vmatprep.subr.mxu0 0.0
    %131 = vmatpush1.xpose.msra.mxu0 0.0
    %132 = vmatprep.subr.mxu0 0.0
    %133 = vmatpush1.xpose.msra.mxu0 0.0
    %134 = vmatprep.subr.mxu0 0.0
    %135 = vmatpush1.xpose.msra.mxu0 0.0
    %136 = vmatprep.subr.mxu0 0.0
    %137 = vmatpush1.xpose.msra.mxu0 0.0
    %138 = vmatprep.subr.mxu0 0.0
    %139 = vmatpush1.xpose.msra.mxu0 0.0
    %140 = vmatprep.subr.mxu0 0.0
    %141 = vmatpush1.xpose.msra.mxu0 0.0
    %142 = vmatprep.subr.mxu0 0.0
    %143 = vmatpush1.xpose.msra.mxu0 0.0
    %144 = vmatprep.subr.mxu0 0.0
    %145 = vmatpush1.xpose.msra.mxu0 0.0
    %146 = vmatprep.subr.mxu0 0.0
    %147 = vmatpush1.xpose.msra.mxu0 0.0
    %148 = vmatprep.subr.mxu0 0.0
    %149 = vmatpush1.xpose.msra.mxu0 0.0
    %150 = vmatprep.subr.mxu0 0.0
    %151 = vmatpush1.xpose.msra.mxu0 0.0
    %152 = vmatprep.subr.mxu0 0.0
    %153 = vmatpush1.xpose.msra.mxu0 0.0
    %154 = vmatprep.subr.mxu0 0.0
    %155 = vmatpush1.xpose.msra.mxu0 0.0
    %156 = vmatprep.subr.mxu0 0.0
    %157 = vmatpush1.xpose.msra.mxu0 0.0
    %158 = vmatprep.subr.mxu0 0.0
    %159 = vmatpush1.xpose.msra.mxu0 0.0
    %160 = vmatprep.subr.mxu0 0.0
    %161 = vmatpush1.xpose.msra.mxu0 0.0
    %162 = vmatprep.subr.mxu0 0.0
    %163 = vmatpush1.xpose.msra.mxu0 0.0
    %164 = vmatprep.subr.mxu0 0.0
    %165 = vmatpush1.xpose.msra.mxu0 0.0
    %166 = vmatprep.subr.mxu0 0.0
    %167 = vmatpush1.xpose.msra.mxu0 0.0
    %168 = vmatprep.subr.mxu0 0.0
    %169 = vmatpush1.xpose.msra.mxu0 0.0
    %170 = vmatprep.subr.mxu0 0.0
    %171 = vmatpush1.xpose.msra.mxu0 0.0
    %172 = vmatprep.subr.mxu0 0.0
    %173 = vmatpush1.xpose.msra.mxu0 0.0
    %174 = vmatprep.subr.mxu0 0.0
    %175 = vmatpush1.xpose.msra.mxu0 0.0
    %176 = vmatprep.subr.mxu0 0.0
    %177 = vmatpush1.xpose.msra.mxu0 0.0
    %178 = vmatprep.mubr.f32.mxu0 0.0
    %179 = vmatmul.mubr.f32.gmra.mrb[0].mxu0 %v88
    %v180 = vpop.f32.mrb[0].mxu0
    %v181 = vadd.f32 %v49, %v180
    %v182 = vpop.f32.mrb[0].mxu0
    %183 = vmatprep.mubr.f32.mxu0 0.0
    %184 = vmatmul.mubr.f32.gmra.mrb[0].mxu0 %v91
    %v185 = vpop.f32.mrb[0].mxu0
    %v186 = vadd.f32 %v54, %v185
    %v187 = vpop.f32.mrb[0].mxu0
    %188 = vmatprep.mubr.f32.mxu0 0.0
    %189 = vmatmul.mubr.f32.gmra.mrb[0].mxu0 %v94
    %v190 = vpop.f32.mrb[0].mxu0
    %v191 = vadd.f32 %v59, %v190
    %v192 = vpop.f32.mrb[0].mxu0
    %193 = vmatprep.mubr.f32.mxu0 0.0
    %194 = vmatmul.mubr.f32.gmra.mrb[0].mxu0 %v97
    %v195 = vpop.f32.mrb[0].mxu0
    %v196 = vadd.f32 %v64, %v195
    %v197 = vpop.f32.mrb[0].mxu0
    %198 = vmatprep.mubr.f32.mxu0 0.0
    %199 = vmatmul.mubr.f32.gmra.mrb[0].mxu0 %v100
    %v200 = vpop.f32.mrb[0].mxu0
    %v201 = vadd.f32 %v69, %v200
    %v202 = vpop.f32.mrb[0].mxu0
    %203 = vmatprep.mubr.f32.mxu0 0.0
    %204 = vmatmul.mubr.f32.gmra.mrb[0].mxu0 %v103
    %v205 = vpop.f32.mrb[0].mxu0
    %v206 = vadd.f32 %v74, %v205
    %v207 = vpop.f32.mrb[0].mxu0
    %208 = vmatprep.mubr.f32.mxu0 0.0
    %209 = vmatmul.mubr.f32.gmra.mrb[0].mxu0 %v106
    %v210 = vpop.f32.mrb[0].mxu0
    %v211 = vadd.f32 %v79, %v210
    %v212 = vpop.f32.mrb[0].mxu0
    %213 = vmatprep.mubr.f32.mxu0 0.0
    %214 = vmatmul.mubr.f32.gmra.mrb[0].mxu0 %v109
    %v215 = vpop.f32.mrb[0].mxu0
    %v216 = vadd.f32 %v84, %v215
    %v217 = vpop.f32.mrb[0].mxu0
    %218 = vdwg.mxu0
    %v219 = vtanh.pop %v181
    %v220 = vtanh.pop %v186
    %v221 = vtanh.pop %v191
    %v222 = vtanh.pop %v196
    %v223 = vtanh.pop %v201
    %v224 = vtanh.pop %v206
    %v225 = vtanh.pop %v211
    %v226 = vtanh.pop %v216
    %v227 = vld [vmem:[%s3] sm:$0xff]
    %v228 = vld [vmem:[%s3 + $0x8] sm:$0xff]
    %v229 = vld [vmem:[%s3 + $0x10] sm:$0xff]
    %v230 = vld [vmem:[%s3 + $0x18] sm:$0xff]
    %v231 = vld [vmem:[%s3 + $0x20] sm:$0xff]
    %v232 = vld [vmem:[%s3 + $0x28] sm:$0xff]
    %v233 = vld [vmem:[%s3 + $0x30] sm:$0xff]
    %v234 = vld [vmem:[%s3 + $0x38] sm:$0xff]
    %v235 = vld [vmem:[%s4] sm:$0xff]
    %v236 = vld [vmem:[%s4 + $0x8] sm:$0xff]
    %v237 = vld [vmem:[%s4 + $0x10] sm:$0xff]
    %v238 = vld [vmem:[%s4 + $0x18] sm:$0xff]
    %v239 = vld [vmem:[%s4 + $0x20] sm:$0xff]
    %v240 = vld [vmem:[%s4 + $0x28] sm:$0xff]
    %v241 = vld [vmem:[%s4 + $0x30] sm:$0xff]
    %v242 = vld [vmem:[%s4 + $0x38] sm:$0xff]
    %244 = vset.pattern.permute.xlu0 0
    %245 = vperm.xlu0 %244, %v235
    %v246 = vpop.permute.xlu0 %245
    %249 = vset.pattern.permute.xlu0 0
    %250 = vperm.xlu0 %249, %v236
    %v251 = vpop.permute.xlu0 %250
    %254 = vset.pattern.permute.xlu0 0
    %255 = vperm.xlu0 %254, %v237
    %v256 = vpop.permute.xlu0 %255
    %259 = vset.pattern.permute.xlu0 0
    %260 = vperm.xlu0 %259, %v238
    %v261 = vpop.permute.xlu0 %260
    %264 = vset.pattern.permute.xlu0 0
    %265 = vperm.xlu0 %264, %v239
    %v266 = vpop.permute.xlu0 %265
    %269 = vset.pattern.permute.xlu0 0
    %270 = vperm.xlu0 %269, %v240
    %v271 = vpop.permute.xlu0 %270
    %274 = vset.pattern.permute.xlu0 0
    %275 = vperm.xlu0 %274, %v241
    %v276 = vpop.permute.xlu0 %275
    %279 = vset.pattern.permute.xlu0 0
    %280 = vperm.xlu0 %279, %v242
    %v281 = vpop.permute.xlu0 %280
    %vm283 = vcmask 523264
    %v285 = vsel %vm283, %v227, 0
    %v288 = vsel %vm283, %v228, 0
    %v291 = vsel %vm283, %v229, 0
    %v294 = vsel %vm283, %v230, 0
    %v297 = vsel %vm283, %v231, 0
    %v300 = vsel %vm283, %v232, 0
    %v303 = vsel %vm283, %v233, 0
    %v306 = vsel %vm283, %v234, 0
    %308 = vmatprep.subr.mxu0 0.0
    %309 = vmatpush1.msra.mxu0 %v219
    %310 = vmatprep.subr.mxu0 0.0
    %311 = vmatpush1.msra.mxu0 %v220
    %312 = vmatprep.subr.mxu0 0.0
    %313 = vmatpush1.msra.mxu0 %v221
    %314 = vmatprep.subr.mxu0 0.0
    %315 = vmatpush1.msra.mxu0 %v222
    %316 = vmatprep.subr.mxu0 0.0
    %317 = vmatpush1.msra.mxu0 %v223
    %318 = vmatprep.subr.mxu0 0.0
    %319 = vmatpush1.msra.mxu0 %v224
    %320 = vmatprep.subr.mxu0 0.0
    %321 = vmatpush1.msra.mxu0 %v225
    %322 = vmatprep.subr.mxu0 0.0
    %323 = vmatpush1.msra.mxu0 %v226
    %324 = vmatprep.subr.mxu0 0.0
    %325 = vmatpush1.msra.mxu0 0.0
    %326 = vmatprep.subr.mxu0 0.0
    %327 = vmatpush1.msra.mxu0 0.0
    %328 = vmatprep.subr.mxu0 0.0
    %329 = vmatpush1.msra.mxu0 0.0
    %330 = vmatprep.subr.mxu0 0.0
    %331 = vmatpush1.msra.mxu0 0.0
    %332 = vmatprep.subr.mxu0 0.0
    %333 = vmatpush1.msra.mxu0 0.0
    %334 = vmatprep.subr.mxu0 0.0
    %335 = vmatpush1.msra.mxu0 0.0
    %336 = vmatprep.subr.mxu0 0.0
    %337 = vmatpush1.msra.mxu0 0.0
    %338 = vmatprep.subr.mxu0 0.0
    %339 = vmatpush1.msra.mxu0 0.0
    %340 = vmatprep.subr.mxu0 0.0
    %341 = vmatpush1.msra.mxu0 0.0
    %342 = vmatprep.subr.mxu0 0.0
    %343 = vmatpush1.msra.mxu0 0.0
    %344 = vmatprep.subr.mxu0 0.0
    %345 = vmatpush1.msra.mxu0 0.0
    %346 = vmatprep.subr.mxu0 0.0
    %347 = vmatpush1.msra.mxu0 0.0
    %348 = vmatprep.subr.mxu0 0.0
    %349 = vmatpush1.msra.mxu0 0.0
    %350 = vmatprep.subr.mxu0 0.0
    %351 = vmatpush1.msra.mxu0 0.0
    %352 = vmatprep.subr.mxu0 0.0
    %353 = vmatpush1.msra.mxu0 0.0
    %354 = vmatprep.subr.mxu0 0.0
    %355 = vmatpush1.msra.mxu0 0.0
    %356 = vmatprep.subr.mxu0 0.0
    %357 = vmatpush1.msra.mxu0 0.0
    %358 = vmatprep.subr.mxu0 0.0
    %359 = vmatpush1.msra.mxu0 0.0
    %360 = vmatprep.subr.mxu0 0.0
    %361 = vmatpush1.msra.mxu0 0.0
    %362 = vmatprep.subr.mxu0 0.0
    %363 = vmatpush1.msra.mxu0 0.0
    %364 = vmatprep.subr.mxu0 0.0
    %365 = vmatpush1.msra.mxu0 0.0
    %366 = vmatprep.subr.mxu0 0.0
    %367 = vmatpush1.msra.mxu0 0.0
    %368 = vmatprep.subr.mxu0 0.0
    %369 = vmatpush1.msra.mxu0 0.0
    %370 = vmatprep.subr.mxu0 0.0
    %371 = vmatpush1.msra.mxu0 0.0
    %372 = vmatprep.mubr.f32.mxu0 0.0
    %373 = vmatmul.mubr.f32.gmra.mrb[0].mxu0 %v285
    %v374 = vpop.f32.mrb[0].mxu0
    %v375 = vadd.f32 %v246, %v374
    %v376 = vpop.f32.mrb[0].mxu0
    %377 = vmatprep.mubr.f32.mxu0 0.0
    %378 = vmatmul.mubr.f32.gmra.mrb[0].mxu0 %v288
    %v379 = vpop.f32.mrb[0].mxu0
    %v380 = vadd.f32 %v251, %v379
    %v381 = vpop.f32.mrb[0].mxu0
    %382 = vmatprep.mubr.f32.mxu0 0.0
    %383 = vmatmul.mubr.f32.gmra.mrb[0].mxu0 %v291
    %v384 = vpop.f32.mrb[0].mxu0
    %v385 = vadd.f32 %v256, %v384
    %v386 = vpop.f32.mrb[0].mxu0
    %387 = vmatprep.mubr.f32.mxu0 0.0
    %388 = vmatmul.mubr.f32.gmra.mrb[0].mxu0 %v294
    %v389 = vpop.f32.mrb[0].mxu0
    %v390 = vadd.f32 %v261, %v389
    %v391 = vpop.f32.mrb[0].mxu0
    %392 = vmatprep.mubr.f32.mxu0 0.0
    %393 = vmatmul.mubr.f32.gmra.mrb[0].mxu0 %v297
    %v394 = vpop.f32.mrb[0].mxu0
    %v395 = vadd.f32 %v266, %v394
    %v396 = vpop.f32.mrb[0].mxu0
    %397 = vmatprep.mubr.f32.mxu0 0.0
    %398 = vmatmul.mubr.f32.gmra.mrb[0].mxu0 %v300
    %v399 = vpop.f32.mrb[0].mxu0
    %v400 = vadd.f32 %v271, %v399
    %v401 = vpop.f32.mrb[0].mxu0
    %402 = vmatprep.mubr.f32.mxu0 0.0
    %403 = vmatmul.mubr.f32.gmra.mrb[0].mxu0 %v303
    %v404 = vpop.f32.mrb[0].mxu0
    %v405 = vadd.f32 %v276, %v404
    %v406 = vpop.f32.mrb[0].mxu0
    %407 = vmatprep.mubr.f32.mxu0 0.0
    %408 = vmatmul.mubr.f32.gmra.mrb[0].mxu0 %v306
    %v409 = vpop.f32.mrb[0].mxu0
    %v410 = vadd.f32 %v281, %v409
    %v411 = vpop.f32.mrb[0].mxu0
    %412 = vdwg.mxu0
    %v413 = vtanh.pop %v375
    %v414 = vtanh.pop %v380
    %v415 = vtanh.pop %v385
    %v416 = vtanh.pop %v390
    %v417 = vtanh.pop %v395
    %v418 = vtanh.pop %v400
    %v419 = vtanh.pop %v405
    %v420 = vtanh.pop %v410
    %v421 = vld [vmem:[%s5] sm:$0x1]
    %v422 = vld [vmem:[#allocation2] sm:$0x1]
    %424 = vset.pattern.permute.xlu0 0
    %425 = vperm.xlu0 %424, %v422
    %v426 = vpop.permute.xlu0 %425
    %v428 = vlaneseq
    %v429 = vshrl.u32 %v428, 7
    %v430 = vsub.s32 0, %v429
    %v431 = vrot.slane %v426, %v430
    %v433 = vsel %vm283, %v421, 0
    %435 = vmatprep.subr.mxu0 0.0
    %436 = vmatpush1.msra.mxu0 %v413
    %437 = vmatprep.subr.mxu0 0.0
    %438 = vmatpush1.msra.mxu0 %v414
    %439 = vmatprep.subr.mxu0 0.0
    %440 = vmatpush1.msra.mxu0 %v415
    %441 = vmatprep.subr.mxu0 0.0
    %442 = vmatpush1.msra.mxu0 %v416
    %443 = vmatprep.subr.mxu0 0.0
    %444 = vmatpush1.msra.mxu0 %v417
    %445 = vmatprep.subr.mxu0 0.0
    %446 = vmatpush1.msra.mxu0 %v418
    %447 = vmatprep.subr.mxu0 0.0
    %448 = vmatpush1.msra.mxu0 %v419
    %449 = vmatprep.subr.mxu0 0.0
    %450 = vmatpush1.msra.mxu0 %v420
    %451 = vmatprep.subr.mxu0 0.0
    %452 = vmatpush1.msra.mxu0 0.0
    %453 = vmatprep.subr.mxu0 0.0
    %454 = vmatpush1.msra.mxu0 0.0
    %455 = vmatprep.subr.mxu0 0.0
    %456 = vmatpush1.msra.mxu0 0.0
    %457 = vmatprep.subr.mxu0 0.0
    %458 = vmatpush1.msra.mxu0 0.0
    %459 = vmatprep.subr.mxu0 0.0
    %460 = vmatpush1.msra.mxu0 0.0
    %461 = vmatprep.subr.mxu0 0.0
    %462 = vmatpush1.msra.mxu0 0.0
    %463 = vmatprep.subr.mxu0 0.0
    %464 = vmatpush1.msra.mxu0 0.0
    %465 = vmatprep.subr.mxu0 0.0
    %466 = vmatpush1.msra.mxu0 0.0
    %467 = vmatprep.subr.mxu0 0.0
    %468 = vmatpush1.msra.mxu0 0.0
    %469 = vmatprep.subr.mxu0 0.0
    %470 = vmatpush1.msra.mxu0 0.0
    %471 = vmatprep.subr.mxu0 0.0
    %472 = vmatpush1.msra.mxu0 0.0
    %473 = vmatprep.subr.mxu0 0.0
    %474 = vmatpush1.msra.mxu0 0.0
    %475 = vmatprep.subr.mxu0 0.0
    %476 = vmatpush1.msra.mxu0 0.0
    %477 = vmatprep.subr.mxu0 0.0
    %478 = vmatpush1.msra.mxu0 0.0
    %479 = vmatprep.subr.mxu0 0.0
    %480 = vmatpush1.msra.mxu0 0.0
    %481 = vmatprep.subr.mxu0 0.0
    %482 = vmatpush1.msra.mxu0 0.0
    %483 = vmatprep.subr.mxu0 0.0
    %484 = vmatpush1.msra.mxu0 0.0
    %485 = vmatprep.subr.mxu0 0.0
    %486 = vmatpush1.msra.mxu0 0.0
    %487 = vmatprep.subr.mxu0 0.0
    %488 = vmatpush1.msra.mxu0 0.0
    %489 = vmatprep.subr.mxu0 0.0
    %490 = vmatpush1.msra.mxu0 0.0
    %491 = vmatprep.subr.mxu0 0.0
    %492 = vmatpush1.msra.mxu0 0.0
    %493 = vmatprep.subr.mxu0 0.0
    %494 = vmatpush1.msra.mxu0 0.0
    %495 = vmatprep.subr.mxu0 0.0
    %496 = vmatpush1.msra.mxu0 0.0
    %497 = vmatprep.subr.mxu0 0.0
    %498 = vmatpush1.msra.mxu0 0.0
    %499 = vmatprep.mubr.f32.mxu0 0.0
    %500 = vmatmul.mubr.f32.gmra.mrb[0].mxu0 %v433
    %v501 = vpop.f32.mrb[0].mxu0
    %v502 = vadd.f32 %v431, %v501
    %v503 = vpop.f32.mrb[0].mxu0
    %504 = vdwg.mxu0
    %vm505 = vcmask 57344
    %506 = vst.msk [vmem:[#allocation3] sm:$0x1] %vm505, %v502
    // Predicated region
    $region30: #{tpu_custom_call.1} parent=1 // pred_check
      _
    $region31: #{tpu_custom_call.1} parent=1 // pred_check_branch
      %508 = sbr.rel (0) target = $region33
    $region32: #{tpu_custom_call.1} parent=1 // pred_region
      %s510 = ssub.s32 16, 16
      %511 = vsyncadd [#allocation4], %s510
      %s513 = sshll.u32 [#allocation3], 4
      %s514 = int_to_ptr.vmem [resolvable:$true] %s513
      %516 = dma.vmem_to_hbm [thread:$0]  %s514, 16, %s7, [#allocation4]
    $region33: #{tpu_custom_call.1} parent=1 // pred_fallthru
      _
    // Predicated region
    $region34: #{tpu_custom_call.1} parent=1 // pred_check
      _
    $region35: #{tpu_custom_call.1} parent=1 // pred_check_branch
      %518 = sbr.rel (0) target = $region37
    $region36: #{tpu_custom_call.1} parent=1 // pred_region
      %519 = dma.done [#allocation4], 16
    $region37: #{tpu_custom_call.1} parent=1 // pred_fallthru
      _
    %520 = vsyncpa [#allocation4], 1

</llo_original>
